<compile_context>
chip_gen: v7x
topology: tpu7x:2x2x1
jax: 0.10.0
libtpu: 0.0.40
codegen_flags: <defaults>
</compile_context>

<pallas_src>
import jax
import jax.numpy as jnp
from jax.experimental import pallas as pl
from jax.experimental.pallas import tpu as pltpu

_LANES = 128


def _round_up(x, m):
    return (x + m - 1) // m * m


def _softplus(x):
    # Numerically stable softplus (matches torch BCEWithLogitsLoss decomposition):
    # max(x, 0) + log1p(exp(-|x|))
    return jnp.maximum(x, 0.0) + jnp.log1p(jnp.exp(-jnp.abs(x)))


def _disc_loss_kernel(xf_ref, xr_ref, proj_ref, b_ref, out_ref):
    i = pl.program_id(1)

    @pl.when(i == 0)
    def _():
        out_ref[...] = jnp.zeros_like(out_ref)

    # Per-pixel 1x1-conv logits, lane-dense: (tm, 512) @ (512, 128) -> (tm, 128).
    # Sign/bias folded into constants:
    #   proj_ref[0] = +P, b_ref[0] = +b  ->  +logit  (fake vs. zeros)
    #   proj_ref[1] = -P, b_ref[1] = -b  ->  -logit  (real vs. ones)
    lf = jnp.dot(xf_ref[...], proj_ref[0],
                 preferred_element_type=jnp.float32) + b_ref[0]
    nr = jnp.dot(xr_ref[...], proj_ref[1],
                 preferred_element_type=jnp.float32) + b_ref[1]

    sp = _softplus(lf) + _softplus(nr)                     # (tm, 128)
    # Tile-aligned fold to the fixed (8, 128) accumulator (pure vreg adds).
    out_ref[...] += sp.reshape(-1, 8, _LANES).sum(axis=0)


def discriminator_loss(real_nhwc, fake_nhwc, w, b, *, tm=2048):
    """real/fake: (N, H, W, C) f32; w: (C, 1); b: (1,). Returns scalar loss."""
    N, H, W, C = real_nhwc.shape
    assert fake_nhwc.shape == real_nhwc.shape
    assert _LANES % C == 0, "channel count must divide 128 for lane packing"

    M = N * H * W                    # pixels per tensor
    K = C * _LANES                   # 512: elements per packed row (128 pixels)
    n_elems = M * C

    r = pl.cdiv(n_elems, K)                  # rows needed to hold real data
    tm_eff = min(tm, _round_up(r, 8))        # row tile (multiple of 8 sublanes)
    nsteps = pl.cdiv(r, 2 * tm_eff)          # steps per megacore half
    r_pad = 2 * nsteps * tm_eff
    pad_pixels = r_pad * _LANES - M          # zero pixels from padding, per tensor

    def prep(x):
        flat = x.reshape(-1)                 # pixel-major, channel-minor (free)
        need = r_pad * K
        if flat.shape[0] != need:
            # TODO(synk): tail-only padding still copies the stream in XLA;
            # in-kernel tail masking would avoid it for non-divisible shapes.
            flat = jnp.concatenate(
                [flat, jnp.zeros((need - flat.shape[0],), flat.dtype)])
        return flat.reshape(r_pad, K)

    xf = prep(fake_nhwc)
    xr = prep(real_nhwc)

    # Block-diagonal 1x1-conv weight: P[l, p] = w[l % C] if l // C == p else 0.
    w_flat = w.reshape(C).astype(jnp.float32)
    proj_pos = jnp.kron(jnp.eye(_LANES, dtype=jnp.float32),
                        w_flat.reshape(C, 1))              # (K, 128)
    proj = jnp.stack([proj_pos, -proj_pos])                # (2, K, 128)
    b0 = b.astype(jnp.float32)[0]
    b2 = jnp.stack([b0, -b0])                              # (2,)

    out = pl.pallas_call(
        _disc_loss_kernel,
        out_shape=jax.ShapeDtypeStruct((2 * 8, _LANES), jnp.float32),
        grid_spec=pltpu.PrefetchScalarGridSpec(
            num_scalar_prefetch=0,
            grid=(2, nsteps),
            in_specs=[
                # fake / real streams: rows sharded across the parallel axis
                pl.BlockSpec((tm_eff, K),
                             lambda p, i, _ns=nsteps: (p * _ns + i, 0)),
                pl.BlockSpec((tm_eff, K),
                             lambda p, i, _ns=nsteps: (p * _ns + i, 0)),
                # [+P, -P] projection; constant index -> staged once
                pl.BlockSpec((2, K, _LANES), lambda p, i: (0, 0, 0)),
                # [+b, -b] biases stay in SMEM
                pl.BlockSpec(memory_space=pltpu.SMEM),
            ],
            # one tiny VMEM-resident accumulator block per parallel half
            out_specs=pl.BlockSpec((8, _LANES), lambda p, i: (p, 0)),
        ),
        compiler_params=pltpu.CompilerParams(
            dimension_semantics=("parallel", "arbitrary"),
            vmem_limit_bytes=48 * 1024 * 1024),
    )(xf, xr, proj, b2)

    # Final reduce in the wrapper; exactly remove the padded zero-pixel terms
    # (each padded pixel contributes softplus(+b) for fake and softplus(-b) for real).
    total = jnp.sum(out)
    correction = pad_pixels * (jax.nn.softplus(b0) + jax.nn.softplus(-b0))
    return 0.5 * (total - correction) / M


def _reference(real_nhwc, fake_nhwc, w, b):
    N, H, W, C = real_nhwc.shape
    logits_f = fake_nhwc.reshape(-1, C) @ w + b[0]
    logits_r = real_nhwc.reshape(-1, C) @ w + b[0]
    loss_f = jnp.mean(jax.nn.softplus(logits_f))    # BCE vs zeros
    loss_r = jnp.mean(jax.nn.softplus(-logits_r))   # BCE vs ones
    return 0.5 * (loss_f + loss_r)


if __name__ == "__main__":
    key = jax.random.PRNGKey(0)
    k_real, k_fake, k_w, k_b = jax.random.split(key, 4)

    # Small shapes consistent with an image discriminator input.
    N, C, H, Wd = 2, 4, 16, 16            # (PyTorch NCHW equivalent)
    real = jax.random.normal(k_real, (N, H, Wd, C), dtype=jnp.float32)  # NHWC
    fake = jax.random.normal(k_fake, (N, H, Wd, C), dtype=jnp.float32)  # NHWC

    # Deterministic synthetic discriminator params (1x1 conv C -> 1).
    # TODO(synk): external `disc` module is arbitrary in PyTorch; modeled here
    # as a fixed 1x1-conv PatchGAN head.
    w = 0.1 * jax.random.normal(k_w, (C, 1), dtype=jnp.float32)
    b = 0.05 * jax.random.normal(k_b, (1,), dtype=jnp.float32)

    loss = discriminator_loss(real, fake, w, b)
    loss = jax.block_until_ready(loss)

    ref = _reference(real, fake, w, b)
    assert jnp.allclose(loss, ref, atol=1e-5, rtol=1e-4), (loss, ref)
    print("KERNEL_OK")
</pallas_src>

<mosaic_0001>
module attributes {stable_mosaic.version = 11 : i64} {
  func.func @_disc_loss_kernel(%arg0: i32, %arg1: i32, %arg2: memref<8x512xf32, #tpu.memory_space<vmem>>, %arg3: memref<8x512xf32, #tpu.memory_space<vmem>>, %arg4: memref<2x512x128xf32, #tpu.memory_space<vmem>>, %arg5: memref<2xf32, #tpu.memory_space<smem>>, %arg6: memref<8x128xf32, #tpu.memory_space<vmem>>) attributes {dimension_semantics = [#tpu.dimension_semantics<parallel>, #tpu.dimension_semantics<arbitrary>], iteration_bounds = array<i64: 2, 1>, scalar_prefetch = 0 : i64, scratch_operands = 0 : i64, tpu.core_type = #tpu.core_type<tc>, window_params = [{transform_indices = @transform_0, window_bounds = array<i64: 8, 512>}, {transform_indices = @transform_1, window_bounds = array<i64: 8, 512>}, {pipeline_mode = #tpu.pipeline_mode<synchronous>, transform_indices = @transform_2, window_bounds = array<i64: 2, 512, 128>}, {transform_indices = @transform_3, window_bounds = array<i64: 2>}, {transform_indices = @transform_4, window_bounds = array<i64: 8, 128>}]} {
    %c0_i32 = arith.constant 0 : i32
    %0 = arith.cmpi eq, %arg1, %c0_i32 : i32
    %1 = arith.extui %0 : i1 to i32
    %c0_i32_0 = arith.constant 0 : i32
    %2 = arith.cmpi ne, %1, %c0_i32_0 : i32
    scf.if %2 {
      %cst_21 = arith.constant 0.000000e+00 : f32
      %39 = vector.broadcast %cst_21 : f32 to vector<8x128xf32>
      %c0_22 = arith.constant 0 : index
      %c0_23 = arith.constant 0 : index
      %40 = vector.load %arg6[%c0_22, %c0_23] : memref<8x128xf32, #tpu.memory_space<vmem>>, vector<8x128xf32>
      tpu.vector_store %arg6[%c0_22, %c0_23], %39 {strides = array<i32>} : memref<8x128xf32, #tpu.memory_space<vmem>>, vector<8x128xf32>,
    } else {
    }
    %c0 = arith.constant 0 : index
    %c0_1 = arith.constant 0 : index
    %3 = vector.load %arg2[%c0, %c0_1] : memref<8x512xf32, #tpu.memory_space<vmem>>, vector<8x512xf32>
    %c0_2 = arith.constant 0 : index
    %c0_3 = arith.constant 0 : index
    %c0_4 = arith.constant 0 : index
    %4 = vector.load %arg4[%c0_2, %c0_3, %c0_4] : memref<2x512x128xf32, #tpu.memory_space<vmem>>, vector<1x512x128xf32>
    %5 = vector.shape_cast %4 : vector<1x512x128xf32> to vector<512x128xf32>
    %cst = arith.constant dense<0.000000e+00> : vector<8x128xf32>
    %6 = tpu.matmul %3, %5, %cst {dimension_numbers = #tpu.dot_dimension_numbers<[1], [0], [0], [1], [0, 0, 1, 1], [], []>} : vector<8x512xf32>, vector<512x128xf32>, vector<8x128xf32> -> vector<8x128xf32>
    %c0_5 = arith.constant 0 : index
    %7 = memref.load %arg5[%c0_5] : memref<2xf32, #tpu.memory_space<smem>>
    %8 = vector.broadcast %7 : f32 to vector<8x128xf32>
    %9 = arith.addf %6, %8 : vector<8x128xf32>
    %c0_6 = arith.constant 0 : index
    %c0_7 = arith.constant 0 : index
    %10 = vector.load %arg3[%c0_6, %c0_7] : memref<8x512xf32, #tpu.memory_space<vmem>>, vector<8x512xf32>
    %c1 = arith.constant 1 : index
    %c0_8 = arith.constant 0 : index
    %c0_9 = arith.constant 0 : index
    %11 = vector.load %arg4[%c1, %c0_8, %c0_9] : memref<2x512x128xf32, #tpu.memory_space<vmem>>, vector<1x512x128xf32>
    %12 = vector.shape_cast %11 : vector<1x512x128xf32> to vector<512x128xf32>
    %cst_10 = arith.constant dense<0.000000e+00> : vector<8x128xf32>
    %13 = tpu.matmul %10, %12, %cst_10 {dimension_numbers = #tpu.dot_dimension_numbers<[1], [0], [0], [1], [0, 0, 1, 1], [], []>} : vector<8x512xf32>, vector<512x128xf32>, vector<8x128xf32> -> vector<8x128xf32>
    %c1_11 = arith.constant 1 : index
    %14 = memref.load %arg5[%c1_11] : memref<2xf32, #tpu.memory_space<smem>>
    %15 = vector.broadcast %14 : f32 to vector<8x128xf32>
    %16 = arith.addf %13, %15 : vector<8x128xf32>
    %cst_12 = arith.constant 0.000000e+00 : f32
    %17 = vector.broadcast %cst_12 : f32 to vector<8x128xf32>
    %18 = arith.maximumf %9, %17 : vector<8x128xf32>
    %19 = math.absf %9 : vector<8x128xf32>
    %cst_13 = arith.constant 0.000000e+00 : f32
    %20 = vector.broadcast %cst_13 : f32 to vector<8x128xf32>
    %21 = arith.subf %20, %19 : vector<8x128xf32>
    %22 = math.exp %21 : vector<8x128xf32>
    %23 = math.log1p %22 : vector<8x128xf32>
    %24 = arith.addf %18, %23 : vector<8x128xf32>
    %cst_14 = arith.constant 0.000000e+00 : f32
    %25 = vector.broadcast %cst_14 : f32 to vector<8x128xf32>
    %26 = arith.maximumf %16, %25 : vector<8x128xf32>
    %27 = math.absf %16 : vector<8x128xf32>
    %cst_15 = arith.constant 0.000000e+00 : f32
    %28 = vector.broadcast %cst_15 : f32 to vector<8x128xf32>
    %29 = arith.subf %28, %27 : vector<8x128xf32>
    %30 = math.exp %29 : vector<8x128xf32>
    %31 = math.log1p %30 : vector<8x128xf32>
    %32 = arith.addf %26, %31 : vector<8x128xf32>
    %33 = arith.addf %24, %32 : vector<8x128xf32>
    %c0_16 = arith.constant 0 : index
    %c0_17 = arith.constant 0 : index
    %34 = vector.load %arg6[%c0_16, %c0_17] : memref<8x128xf32, #tpu.memory_space<vmem>>, vector<8x128xf32>
    %35 = vector.shape_cast %33 : vector<8x128xf32> to vector<1x8x128xf32>
    %cst_18 = arith.constant dense<0.000000e+00> : vector<8x128xf32>
    %36 = vector.multi_reduction <add>, %35, %cst_18 [0] : vector<1x8x128xf32> to vector<8x128xf32>
    %37 = arith.addf %34, %36 : vector<8x128xf32>
    %c0_19 = arith.constant 0 : index
    %c0_20 = arith.constant 0 : index
    %38 = vector.load %arg6[%c0_19, %c0_20] : memref<8x128xf32, #tpu.memory_space<vmem>>, vector<8x128xf32>
    tpu.vector_store %arg6[%c0_19, %c0_20], %37 {strides = array<i32>} : memref<8x128xf32, #tpu.memory_space<vmem>>, vector<8x128xf32>,
    return
  }
  func.func @transform_0(%arg0: i32, %arg1: i32) -> (i32, i32) {
    %c1_i32 = arith.constant 1 : i32
    %0 = arith.muli %arg0, %c1_i32 : i32
    %1 = arith.addi %0, %arg1 : i32
    %c0_i32 = arith.constant 0 : i32
    %c0_i32_0 = arith.constant 0 : i32
    return %1, %c0_i32 : i32, i32
  }
  func.func @transform_1(%arg0: i32, %arg1: i32) -> (i32, i32) {
    %c1_i32 = arith.constant 1 : i32
    %0 = arith.muli %arg0, %c1_i32 : i32
    %1 = arith.addi %0, %arg1 : i32
    %c0_i32 = arith.constant 0 : i32
    %c0_i32_0 = arith.constant 0 : i32
    return %1, %c0_i32 : i32, i32
  }
  func.func @transform_2(%arg0: i32, %arg1: i32) -> (i32, i32, i32) {
    %c0_i32 = arith.constant 0 : i32
    %c0_i32_0 = arith.constant 0 : i32
    %c0_i32_1 = arith.constant 0 : i32
    %c0_i32_2 = arith.constant 0 : i32
    return %c0_i32, %c0_i32_0, %c0_i32_1 : i32, i32, i32
  }
  func.func @transform_3(%arg0: i32, %arg1: i32) -> i32 {
    %c0_i32 = arith.constant 0 : i32
    %c0_i32_0 = arith.constant 0 : i32
    return %c0_i32 : i32
  }
  func.func @transform_4(%arg0: i32, %arg1: i32) -> (i32, i32) {
    %c0_i32 = arith.constant 0 : i32
    %c0_i32_0 = arith.constant 0 : i32
    return %arg0, %c0_i32 : i32, i32
  }
}

</mosaic_0001>

<llo_original>
// kernel: tpu_custom_call.1
$region0: #{tpu_custom_call.1}
  #allocation0 [shape = 'u32[]', space=smem, size = 0x4, offset = 0x4, fixed_abs, tag = 'smem constant byte address 0x4 - core index']
  #allocation1 [shape = 'u32[144,128]{1,0:T(1,128)}', space=vmem, size = 0x12000, scoped, tag = 'internal scratch']
  %s0 = inlined_call_operand.hbm [shape: f32[16,512], index: 0, kind: input, shape index: {}]
  %s1 = inlined_call_operand.hbm [shape: f32[16,512], index: 1, kind: input, shape index: {}]
  %s2 = inlined_call_operand.hbm [shape: f32[2,512,128], index: 2, kind: input, shape index: {}]
  %s3 = inlined_call_operand.vmem [shape: f32[2], index: 3, kind: input, shape index: {}]
  %s4 = inlined_call_operand.hbm [shape: f32[16,128], index: 4, kind: output, shape index: {}]
  %s5 = sld [smem:[#allocation0]]
  $region69: #{tpu_custom_call.1} parent=0
    _
  %s7 = ssub.s32 1, %s5
  %s8 = scalar_select 0, %s7, %s5
  $region1: #{tpu_custom_call.1} parent=0
    #allocation2 [shape = 'u8[32768]{0}', space=vmem, size = 0x8000, scoped, tag = 'input window, operand 0']
    #allocation3 [shape = 's32[2]{0}', space=sflag, size = 0x8, scoped, tag = 'scoped memory for tpu_custom_call.1']
    #allocation4 [shape = 's32[2]{0}', space=sflag, size = 0x8, scoped, tag = 'scoped memory for tpu_custom_call.1']
    #allocation5 [shape = 's32[2]{0}', space=sflag, size = 0x8, scoped, tag = 'scoped memory for tpu_custom_call.1']
    #allocation6 [shape = 'u8[32768]{0}', space=vmem, size = 0x8000, scoped, tag = 'input window, operand 1']
    #allocation7 [shape = 's32[2]{0}', space=sflag, size = 0x8, scoped, tag = 'scoped memory for tpu_custom_call.1']
    #allocation8 [shape = 'u8[524288]{0}', space=vmem, size = 0x80000, scoped, tag = 'input window, operand 2, single buffered']
    #allocation9 [shape = 'u8[512]{0}', space=smem, size = 0x200, scoped, tag = 'input window, operand 3, single buffered']
    #allocation10 [shape = 'u8[8192]{0}', space=vmem, size = 0x2000, scoped, tag = 'output window, operand 0']
    %9 = vsyncpa [#allocation3], 0
    %s10 = scalar_lea.sflag [#allocation3], 1
    %11 = vsyncpa %s10, 0
    %12 = vsyncpa [#allocation7], 0
    %s13 = scalar_lea.sflag [#allocation7], 1
    %14 = vsyncpa %s13, 0
    %15 = vsyncpa [#allocation5], 0
    %16 = vsyncpa [#allocation4], 0
    %s17 = scalar_lea.sflag [#allocation4], 1
    %18 = vsyncpa %s17, 0
    loop: start=0, step=1, limit=4
    $region2: #{tpu_custom_call.1} parent=1 // loop_pre_header
      _
    $region3: #{tpu_custom_call.1} parent=1 // loop_header
      %s20 = sphi 0, %s24
      %p21 = scmp.ge.s32.totalorder %s20, 4
      %s27 = sphi 0, %s39
      %s28 = sphi 0, %s35
      %s29 = sphi 0, %s27
      %s30 = sphi 0, %s28
      %s31 = sphi 0, %s29
      %s32 = sphi 0, %s30
      %s44 = sphi 0, %s46
      %s47 = sphi 0, %s44
      %s48 = sphi 0, %s47
      %s64 = sphi 0, %s48
      %s72 = sphi 0, %s74
      %s75 = sphi 0, %s72
      %s76 = sphi 0, %s75
      %s92 = sphi 0, %s76
      %s96 = sphi 0, %s96
      %s98 = sphi 0, %s96
      %s99 = sphi 0, %s98
      %s113 = sphi 0, %s99
      %s117 = sphi 0, %s117
      %s119 = sphi 0, %s117
      %s120 = sphi 0, %s119
      %s134 = sphi 0, %s120
      %s140 = sphi 0, %s142
      %s143 = sphi 0, %s140
      %s144 = sphi 0, %s143
      %s160 = sphi 0, %s144
    $region4: #{tpu_custom_call.1} parent=1 // loop_header_branch
      %23 = sbr.rel (%p21) target = $region8
    $region5: #{tpu_custom_call.1} parent=1 // loop_body
      %s25 = ssub.s32 %s20, 1
      %s26 = ssub.s32 %s20, 2
      %s33 = sadd.s32 1, %s28
      %p34 = scmp.ge.s32.totalorder %s33, 1
      %s35 = scalar_select %p34, 0, %s33
      %s36 = sadd.s32 1, %s27
      %s37 = scalar_select %p34, %s36, %s27
      %p38 = scmp.ge.s32.totalorder %s37, 2
      %s39 = scalar_select %p38, 0, %s37
      %s40 = sadd.s32 %s27, %s28
      %s41 = sadd.s32 %s39, %s35
      %s42 = ssub.s32 %s40, %s41
      %p43 = scmp.eq.s32.totalorder %s42, 0
      %s45 = sadd.s32 %s44, 1
      %s46 = scalar_select %p43, %s44, %s45
      %p49 = pneg %p43
      %p50 = scmp.eq.s32.totalorder %s20, 1
      %p51 = por %p49, %p50
      %p52 = scmp.ne.s32.totalorder %s44, %s47
      %p53 = scmp.eq.s32.totalorder %s20, 0
      %p54 = por %p52, %p53
      %p55 = scmp.ne.s32.totalorder %s44, %s47
      %p56 = scmp.eq.s32.totalorder %s25, 1
      %p57 = por %p55, %p56
      %p58 = scmp.ne.s32.totalorder %s47, %s48
      %p59 = scmp.eq.s32.totalorder %s25, 0
      %p60 = por %p58, %p59
      %p61 = scmp.ne.s32.totalorder %s47, %s48
      %p62 = scmp.eq.s32.totalorder %s26, 1
      %p63 = por %p61, %p62
      %p65 = scmp.ne.s32.totalorder %s48, %s64
      %p66 = scmp.eq.s32.totalorder %s26, 0
      %p67 = por %p65, %p66
      %s68 = sadd.s32 %s27, %s28
      %s69 = sadd.s32 %s39, %s35
      %s70 = ssub.s32 %s68, %s69
      %p71 = scmp.eq.s32.totalorder %s70, 0
      %s73 = sadd.s32 %s72, 1
      %s74 = scalar_select %p71, %s72, %s73
      %p77 = pneg %p71
      %p78 = scmp.eq.s32.totalorder %s20, 1
      %p79 = por %p77, %p78
      %p80 = scmp.ne.s32.totalorder %s72, %s75
      %p81 = scmp.eq.s32.totalorder %s20, 0
      %p82 = por %p80, %p81
      %p83 = scmp.ne.s32.totalorder %s72, %s75
      %p84 = scmp.eq.s32.totalorder %s25, 1
      %p85 = por %p83, %p84
      %p86 = scmp.ne.s32.totalorder %s75, %s76
      %p87 = scmp.eq.s32.totalorder %s25, 0
      %p88 = por %p86, %p87
      %p89 = scmp.ne.s32.totalorder %s75, %s76
      %p90 = scmp.eq.s32.totalorder %s26, 1
      %p91 = por %p89, %p90
      %p93 = scmp.ne.s32.totalorder %s76, %s92
      %p94 = scmp.eq.s32.totalorder %s26, 0
      %p95 = por %p93, %p94
      %s97 = sadd.s32 %s96, 1
      %p100 = scmp.eq.s32.totalorder %s20, 1
      %p101 = scmp.ne.s32.totalorder %s96, %s98
      %p102 = scmp.eq.s32.totalorder %s20, 0
      %p103 = por %p101, %p102
      %p104 = scmp.ne.s32.totalorder %s96, %s98
      %p105 = scmp.eq.s32.totalorder %s25, 1
      %p106 = por %p104, %p105
      %p107 = scmp.ne.s32.totalorder %s98, %s99
      %p108 = scmp.eq.s32.totalorder %s25, 0
      %p109 = por %p107, %p108
      %p110 = scmp.ne.s32.totalorder %s98, %s99
      %p111 = scmp.eq.s32.totalorder %s26, 1
      %p112 = por %p110, %p111
      %p114 = scmp.ne.s32.totalorder %s99, %s113
      %p115 = scmp.eq.s32.totalorder %s26, 0
      %p116 = por %p114, %p115
      %s118 = sadd.s32 %s117, 1
      %p121 = scmp.eq.s32.totalorder %s20, 1
      %p122 = scmp.ne.s32.totalorder %s117, %s119
      %p123 = scmp.eq.s32.totalorder %s20, 0
      %p124 = por %p122, %p123
      %p125 = scmp.ne.s32.totalorder %s117, %s119
      %p126 = scmp.eq.s32.totalorder %s25, 1
      %p127 = por %p125, %p126
      %p128 = scmp.ne.s32.totalorder %s119, %s120
      %p129 = scmp.eq.s32.totalorder %s25, 0
      %p130 = por %p128, %p129
      %p131 = scmp.ne.s32.totalorder %s119, %s120
      %p132 = scmp.eq.s32.totalorder %s26, 1
      %p133 = por %p131, %p132
      %p135 = scmp.ne.s32.totalorder %s120, %s134
      %p136 = scmp.eq.s32.totalorder %s26, 0
      %p137 = por %p135, %p136
      %s138 = ssub.s32 %s27, %s39
      %p139 = scmp.eq.s32.totalorder %s138, 0
      %s141 = sadd.s32 %s140, 1
      %s142 = scalar_select %p139, %s140, %s141
      %p145 = pneg %p139
      %p146 = scmp.eq.s32.totalorder %s20, 1
      %p147 = por %p145, %p146
      %p148 = scmp.ne.s32.totalorder %s140, %s143
      %p149 = scmp.eq.s32.totalorder %s20, 0
      %p150 = por %p148, %p149
      %p151 = scmp.ne.s32.totalorder %s140, %s143
      %p152 = scmp.eq.s32.totalorder %s25, 1
      %p153 = por %p151, %p152
      %p154 = scmp.ne.s32.totalorder %s143, %s144
      %p155 = scmp.eq.s32.totalorder %s25, 0
      %p156 = por %p154, %p155
      %p157 = scmp.ne.s32.totalorder %s143, %s144
      %p158 = scmp.eq.s32.totalorder %s26, 1
      %p159 = por %p157, %p158
      %p161 = scmp.ne.s32.totalorder %s144, %s160
      %p162 = scmp.eq.s32.totalorder %s26, 0
      %p163 = por %p161, %p162
      %p164 = scmp.le.s32.totalorder 1, %s20
      %p165 = scmp.lt.s32.totalorder %s20, 3
      %p166 = pnand %p164, %p165
      %p167 = pneg %p166
      // Predicated region
      $region9: #{tpu_custom_call.1} parent=5 // pred_check
        _
      $region10: #{tpu_custom_call.1} parent=5 // pred_check_branch
        %169 = sbr.rel (%p166) target = $region12
      $region11: #{tpu_custom_call.1} parent=5 // pred_region
        %s170 = ssub.s32 %s20, 1
        // Predicated region
        $region13: #{tpu_custom_call.1} parent=11 // pred_check
          %p171 = pneg %p109
        $region14: #{tpu_custom_call.1} parent=11 // pred_check_branch
          %173 = sbr.rel (%p171) target = $region16
        $region15: #{tpu_custom_call.1} parent=11 // pred_region
          %s175 = ssub.s32 16384, 16384
          %176 = vsyncadd [#allocation7], %s175
          %s177 = sshll.u32 [#allocation8], 4
          %s178 = int_to_ptr.vmem [resolvable:$true] %s177
          %183 = dma.hbm_to_vmem [thread:$0]  %s2, 16384, %s178, [#allocation7], 128, 128, 8
        $region16: #{tpu_custom_call.1} parent=11 // pred_fallthru
          _
        // Predicated region
        $region17: #{tpu_custom_call.1} parent=11 // pred_check
          %p184 = pneg %p130
        $region18: #{tpu_custom_call.1} parent=11 // pred_check_branch
          %186 = sbr.rel (%p184) target = $region20
        $region19: #{tpu_custom_call.1} parent=11 // pred_region
          %s188 = ssub.s32 16, 16
          %189 = vsyncadd [#allocation5], %s188
          %s191 = sshll.u32 %s3, 4
          %s192 = int_to_ptr.vmem [resolvable:$true] %s191
          %194 = dma.vmem_to_smem %s192, 16, [#allocation9], [#allocation5]
        $region20: #{tpu_custom_call.1} parent=11 // pred_fallthru
          _
      $region12: #{tpu_custom_call.1} parent=5 // pred_fallthru
        _
      %p195 = scmp.lt.s32.totalorder %s20, 2
      // Predicated region
      $region21: #{tpu_custom_call.1} parent=5 // pred_check
        %p196 = pneg %p195
      $region22: #{tpu_custom_call.1} parent=5 // pred_check_branch
        %198 = sbr.rel (%p196) target = $region24
      $region23: #{tpu_custom_call.1} parent=5 // pred_region
        // Predicated region
        $region25: #{tpu_custom_call.1} parent=23 // pred_check
          %p199 = pneg %p54
        $region26: #{tpu_custom_call.1} parent=23 // pred_check_branch
          %201 = sbr.rel (%p199) target = $region28
        $region27: #{tpu_custom_call.1} parent=23 // pred_region
          %s202 = sand.u32 %s44, 1
          %s203 = scalar_lea.sflag [#allocation3], %s202
          %s204 = sand.u32 %s44, 1
          %s205 = smul.addr %s204, 32
          %s206 = scalar_lea.vmem [#allocation2], %s205
          %s207 = sadd.s32 %s27, %s28
          %s209 = ssub.s32 512, 512
          %210 = vsyncadd %s203, %s209
          %s211 = smul.addr %s207, 4
          %s212 = smul.addr %s211, 128
          %s213 = scalar_lea.hbm %s0, %s212
          %s215 = sshll.u32 %s206, 4
          %s216 = int_to_ptr.vmem [resolvable:$true] %s215
          %218 = dma.hbm_to_vmem [thread:$0]  %s213, 512, %s216, %s203
        $region28: #{tpu_custom_call.1} parent=23 // pred_fallthru
          _
        // Predicated region
        $region29: #{tpu_custom_call.1} parent=23 // pred_check
          %p219 = pneg %p82
        $region30: #{tpu_custom_call.1} parent=23 // pred_check_branch
          %221 = sbr.rel (%p219) target = $region32
        $region31: #{tpu_custom_call.1} parent=23 // pred_region
          %s222 = sand.u32 %s20, 1
          %s223 = scalar_lea.sflag [#allocation7], %s222
          %s224 = sand.u32 %s72, 1
          %s225 = smul.addr %s224, 32
          %s226 = scalar_lea.vmem [#allocation6], %s225
          %s227 = sadd.s32 %s27, %s28
          %s229 = ssub.s32 512, 512
          %230 = vsyncadd %s223, %s229
          %s231 = smul.addr %s227, 4
          %s232 = smul.addr %s231, 128
          %s233 = scalar_lea.hbm %s1, %s232
          %s235 = sshll.u32 %s226, 4
          %s236 = int_to_ptr.vmem [resolvable:$true] %s235
          %238 = dma.hbm_to_vmem [thread:$0]  %s233, 512, %s236, %s223
        $region32: #{tpu_custom_call.1} parent=23 // pred_fallthru
          _
      $region24: #{tpu_custom_call.1} parent=5 // pred_fallthru
        _
      %p239 = scmp.le.s32.totalorder 1, %s20
      %p240 = scmp.lt.s32.totalorder %s20, 3
      %p241 = pnand %p239, %p240
      %p242 = pneg %p241
      // Predicated region
      $region33: #{tpu_custom_call.1} parent=5 // pred_check
        _
      $region34: #{tpu_custom_call.1} parent=5 // pred_check_branch
        %244 = sbr.rel (%p241) target = $region36
      $region35: #{tpu_custom_call.1} parent=5 // pred_region
        %s245 = ssub.s32 %s20, 1
        %s246 = sand.u32 %s47, 1
        %s247 = scalar_lea.sflag [#allocation3], %s246
        %s248 = sand.u32 %s47, 1
        %s249 = smul.addr %s248, 32
        %s250 = scalar_lea.vmem [#allocation2], %s249
        // Predicated region
        $region37: #{tpu_custom_call.1} parent=35 // pred_check
          %p251 = pneg %p60
        $region38: #{tpu_custom_call.1} parent=35 // pred_check_branch
          %253 = sbr.rel (%p251) target = $region40
        $region39: #{tpu_custom_call.1} parent=35 // pred_region
          %254 = dma.done %s247, 512
        $region40: #{tpu_custom_call.1} parent=35 // pred_fallthru
          _
        %s255 = sand.u32 %s25, 1
        %s256 = scalar_lea.sflag [#allocation7], %s255
        %s257 = sand.u32 %s75, 1
        %s258 = smul.addr %s257, 32
        %s259 = scalar_lea.vmem [#allocation6], %s258
        // Predicated region
        $region41: #{tpu_custom_call.1} parent=35 // pred_check
          %p260 = pneg %p88
        $region42: #{tpu_custom_call.1} parent=35 // pred_check_branch
          %262 = sbr.rel (%p260) target = $region44
        $region43: #{tpu_custom_call.1} parent=35 // pred_region
          %263 = dma.done %s256, 512
        $region44: #{tpu_custom_call.1} parent=35 // pred_fallthru
          _
        // Predicated region
        $region45: #{tpu_custom_call.1} parent=35 // pred_check
          %p264 = pneg %p109
        $region46: #{tpu_custom_call.1} parent=35 // pred_check_branch
          %266 = sbr.rel (%p264) target = $region48
        $region47: #{tpu_custom_call.1} parent=35 // pred_region
          %267 = dma.done [#allocation7], 16384
        $region48: #{tpu_custom_call.1} parent=35 // pred_fallthru
          _
        // Predicated region
        $region49: #{tpu_custom_call.1} parent=35 // pred_check
          %p268 = pneg %p130
        $region50: #{tpu_custom_call.1} parent=35 // pred_check_branch
          %270 = sbr.rel (%p268) target = $region52
        $region51: #{tpu_custom_call.1} parent=35 // pred_region
          %271 = dma.done [#allocation5], 16
        $region52: #{tpu_custom_call.1} parent=35 // pred_fallthru
          _
        %272 = sfence
        %s273 = sand.u32 %s47, 1
        %s274 = scalar_lea.sflag [#allocation3], %s273
        %s275 = sand.u32 %s47, 1
        %s276 = smul.addr %s275, 32
        %s277 = scalar_lea.vmem [#allocation2], %s276
        %p278 = pneg %p60
        %p279 = pneg %p57
        %s280 = sand.u32 %s25, 1
        %s281 = scalar_lea.sflag [#allocation7], %s280
        %s282 = sand.u32 %s75, 1
        %s283 = smul.addr %s282, 32
        %s284 = scalar_lea.vmem [#allocation6], %s283
        %p285 = pneg %p88
        %p286 = pneg %p85
        %p287 = pneg %p109
        %p288 = pneg %p106
        %p289 = pneg %p130
        %p290 = pneg %p127
        %p291 = pneg %p156
        %p292 = pneg %p153
        %s293 = sand.u32 %s143, 1
        %s294 = scalar_lea.sflag [#allocation4], %s293
        %s295 = sand.u32 %s143, 1
        %s296 = smul.addr %s295, 8
        %s297 = scalar_lea.vmem [#allocation10], %s296
        %s298 = sadd.s32 %s29, %s30
        %s299 = sadd.s32 %s29, %s30
        %p300 = scmp.eq.s32.totalorder %s30, 0
        // Predicated region
        $region53: #{tpu_custom_call.1} parent=35 // pred_check
          %p301 = pneg %p300
        $region54: #{tpu_custom_call.1} parent=35 // pred_check_branch
          %303 = sbr.rel (%p301) target = $region56
        $region55: #{tpu_custom_call.1} parent=35 // pred_region
          %304 = vst [vmem:[%s297] sm:$0xff] 0.0
        $region56: #{tpu_custom_call.1} parent=35 // pred_fallthru
          _
        %v305 = vld [vmem:[%s250] sm:$0xff]
        %v306 = vld [vmem:[%s250 + $0x8] sm:$0xff]
        %v307 = vld [vmem:[%s250 + $0x10] sm:$0xff]
        %v308 = vld [vmem:[%s250 + $0x18] sm:$0xff]
        %v309 = vld [vmem:[#allocation8] sm:$0xff]
        %v310 = vld [vmem:[#allocation8 + $0x8] sm:$0xff]
        %v311 = vld [vmem:[#allocation8 + $0x10] sm:$0xff]
        %v312 = vld [vmem:[#allocation8 + $0x18] sm:$0xff]
        %v313 = vld [vmem:[#allocation8 + $0x20] sm:$0xff]
        %v314 = vld [vmem:[#allocation8 + $0x28] sm:$0xff]
        %v315 = vld [vmem:[#allocation8 + $0x30] sm:$0xff]
        %v316 = vld [vmem:[#allocation8 + $0x38] sm:$0xff]
        %v317 = vld [vmem:[#allocation8 + $0x40] sm:$0xff]
        %v318 = vld [vmem:[#allocation8 + $0x48] sm:$0xff]
        %v319 = vld [vmem:[#allocation8 + $0x50] sm:$0xff]
        %v320 = vld [vmem:[#allocation8 + $0x58] sm:$0xff]
        %v321 = vld [vmem:[#allocation8 + $0x60] sm:$0xff]
        %v322 = vld [vmem:[#allocation8 + $0x68] sm:$0xff]
        %v323 = vld [vmem:[#allocation8 + $0x70] sm:$0xff]
        %v324 = vld [vmem:[#allocation8 + $0x78] sm:$0xff]
        %v325 = vld [vmem:[#allocation8 + $0x80] sm:$0xff]
        %v326 = vld [vmem:[#allocation8 + $0x88] sm:$0xff]
        %v327 = vld [vmem:[#allocation8 + $0x90] sm:$0xff]
        %v328 = vld [vmem:[#allocation8 + $0x98] sm:$0xff]
        %v329 = vld [vmem:[#allocation8 + $0xa0] sm:$0xff]
        %v330 = vld [vmem:[#allocation8 + $0xa8] sm:$0xff]
        %v331 = vld [vmem:[#allocation8 + $0xb0] sm:$0xff]
        %v332 = vld [vmem:[#allocation8 + $0xb8] sm:$0xff]
        %v333 = vld [vmem:[#allocation8 + $0xc0] sm:$0xff]
        %v334 = vld [vmem:[#allocation8 + $0xc8] sm:$0xff]
        %v335 = vld [vmem:[#allocation8 + $0xd0] sm:$0xff]
        %v336 = vld [vmem:[#allocation8 + $0xd8] sm:$0xff]
        %v337 = vld [vmem:[#allocation8 + $0xe0] sm:$0xff]
        %v338 = vld [vmem:[#allocation8 + $0xe8] sm:$0xff]
        %v339 = vld [vmem:[#allocation8 + $0xf0] sm:$0xff]
        %v340 = vld [vmem:[#allocation8 + $0xf8] sm:$0xff]
        %v341 = vld [vmem:[#allocation8 + $0x100] sm:$0xff]
        %v342 = vld [vmem:[#allocation8 + $0x108] sm:$0xff]
        %v343 = vld [vmem:[#allocation8 + $0x110] sm:$0xff]
        %v344 = vld [vmem:[#allocation8 + $0x118] sm:$0xff]
        %v345 = vld [vmem:[#allocation8 + $0x120] sm:$0xff]
        %v346 = vld [vmem:[#allocation8 + $0x128] sm:$0xff]
        %v347 = vld [vmem:[#allocation8 + $0x130] sm:$0xff]
        %v348 = vld [vmem:[#allocation8 + $0x138] sm:$0xff]
        %v349 = vld [vmem:[#allocation8 + $0x140] sm:$0xff]
        %v350 = vld [vmem:[#allocation8 + $0x148] sm:$0xff]
        %v351 = vld [vmem:[#allocation8 + $0x150] sm:$0xff]
        %v352 = vld [vmem:[#allocation8 + $0x158] sm:$0xff]
        %v353 = vld [vmem:[#allocation8 + $0x160] sm:$0xff]
        %v354 = vld [vmem:[#allocation8 + $0x168] sm:$0xff]
        %v355 = vld [vmem:[#allocation8 + $0x170] sm:$0xff]
        %v356 = vld [vmem:[#allocation8 + $0x178] sm:$0xff]
        %v357 = vld [vmem:[#allocation8 + $0x180] sm:$0xff]
        %v358 = vld [vmem:[#allocation8 + $0x188] sm:$0xff]
        %v359 = vld [vmem:[#allocation8 + $0x190] sm:$0xff]
        %v360 = vld [vmem:[#allocation8 + $0x198] sm:$0xff]
        %v361 = vld [vmem:[#allocation8 + $0x1a0] sm:$0xff]
        %v362 = vld [vmem:[#allocation8 + $0x1a8] sm:$0xff]
        %v363 = vld [vmem:[#allocation8 + $0x1b0] sm:$0xff]
        %v364 = vld [vmem:[#allocation8 + $0x1b8] sm:$0xff]
        %v365 = vld [vmem:[#allocation8 + $0x1c0] sm:$0xff]
        %v366 = vld [vmem:[#allocation8 + $0x1c8] sm:$0xff]
        %v367 = vld [vmem:[#allocation8 + $0x1d0] sm:$0xff]
        %v368 = vld [vmem:[#allocation8 + $0x1d8] sm:$0xff]
        %v369 = vld [vmem:[#allocation8 + $0x1e0] sm:$0xff]
        %v370 = vld [vmem:[#allocation8 + $0x1e8] sm:$0xff]
        %v371 = vld [vmem:[#allocation8 + $0x1f0] sm:$0xff]
        %v372 = vld [vmem:[#allocation8 + $0x1f8] sm:$0xff]
        %s373 = sld [smem:[#allocation9]]
        %v374 = vstv %s373
        %375 = vmatprep.subr.mxu0 0.0
        %376 = vmatpush1.msra.mxu0 %v309
        %377 = vmatprep.subr.mxu0 0.0
        %378 = vmatpush1.msra.mxu0 %v310
        %379 = vmatprep.subr.mxu0 0.0
        %380 = vmatpush1.msra.mxu0 %v311
        %381 = vmatprep.subr.mxu0 0.0
        %382 = vmatpush1.msra.mxu0 %v312
        %383 = vmatprep.subr.mxu0 0.0
        %384 = vmatpush1.msra.mxu0 %v313
        %385 = vmatprep.subr.mxu0 0.0
        %386 = vmatpush1.msra.mxu0 %v314
        %387 = vmatprep.subr.mxu0 0.0
        %388 = vmatpush1.msra.mxu0 %v315
        %389 = vmatprep.subr.mxu0 0.0
        %390 = vmatpush1.msra.mxu0 %v316
        %391 = vmatprep.subr.mxu0 0.0
        %392 = vmatpush1.msra.mxu0 %v317
        %393 = vmatprep.subr.mxu0 0.0
        %394 = vmatpush1.msra.mxu0 %v318
        %395 = vmatprep.subr.mxu0 0.0
        %396 = vmatpush1.msra.mxu0 %v319
        %397 = vmatprep.subr.mxu0 0.0
        %398 = vmatpush1.msra.mxu0 %v320
        %399 = vmatprep.subr.mxu0 0.0
        %400 = vmatpush1.msra.mxu0 %v321
        %401 = vmatprep.subr.mxu0 0.0
        %402 = vmatpush1.msra.mxu0 %v322
        %403 = vmatprep.subr.mxu0 0.0
        %404 = vmatpush1.msra.mxu0 %v323
        %405 = vmatprep.subr.mxu0 0.0
        %406 = vmatpush1.msra.mxu0 %v324
        %407 = vmatprep.subr.mxu0 0.0
        %408 = vmatpush1.msra.mxu0 %v325
        %409 = vmatprep.subr.mxu0 0.0
        %410 = vmatpush1.msra.mxu0 %v326
        %411 = vmatprep.subr.mxu0 0.0
        %412 = vmatpush1.msra.mxu0 %v327
        %413 = vmatprep.subr.mxu0 0.0
        %414 = vmatpush1.msra.mxu0 %v328
        %415 = vmatprep.subr.mxu0 0.0
        %416 = vmatpush1.msra.mxu0 %v329
        %417 = vmatprep.subr.mxu0 0.0
        %418 = vmatpush1.msra.mxu0 %v330
        %419 = vmatprep.subr.mxu0 0.0
        %420 = vmatpush1.msra.mxu0 %v331
        %421 = vmatprep.subr.mxu0 0.0
        %422 = vmatpush1.msra.mxu0 %v332
        %423 = vmatprep.subr.mxu0 0.0
        %424 = vmatpush1.msra.mxu0 %v333
        %425 = vmatprep.subr.mxu0 0.0
        %426 = vmatpush1.msra.mxu0 %v334
        %427 = vmatprep.subr.mxu0 0.0
        %428 = vmatpush1.msra.mxu0 %v335
        %429 = vmatprep.subr.mxu0 0.0
        %430 = vmatpush1.msra.mxu0 %v336
        %431 = vmatprep.subr.mxu0 0.0
        %432 = vmatpush1.msra.mxu0 %v337
        %433 = vmatprep.subr.mxu0 0.0
        %434 = vmatpush1.msra.mxu0 %v338
        %435 = vmatprep.subr.mxu0 0.0
        %436 = vmatpush1.msra.mxu0 %v339
        %437 = vmatprep.subr.mxu0 0.0
        %438 = vmatpush1.msra.mxu0 %v340
        %439 = vmatprep.mubr.f32.mxu0 %v306
        %440 = vmatmul.mubr.f32.gmra.mrb[0].mxu0 %v305
        %v441 = vpop.f32.mrb[0].mxu0
        %v442 = vadd.f32 %v374, %v441
        %v443 = vpop.f32.mrb[0].mxu0
        %444 = vdwg.mxu0
        %445 = vmatprep.subr.mxu0 0.0
        %446 = vmatpush1.msra.mxu0 %v341
        %447 = vmatprep.subr.mxu0 0.0
        %448 = vmatpush1.msra.mxu0 %v342
        %449 = vmatprep.subr.mxu0 0.0
        %450 = vmatpush1.msra.mxu0 %v343
        %451 = vmatprep.subr.mxu0 0.0
        %452 = vmatpush1.msra.mxu0 %v344
        %453 = vmatprep.subr.mxu0 0.0
        %454 = vmatpush1.msra.mxu0 %v345
        %455 = vmatprep.subr.mxu0 0.0
        %456 = vmatpush1.msra.mxu0 %v346
        %457 = vmatprep.subr.mxu0 0.0
        %458 = vmatpush1.msra.mxu0 %v347
        %459 = vmatprep.subr.mxu0 0.0
        %460 = vmatpush1.msra.mxu0 %v348
        %461 = vmatprep.subr.mxu0 0.0
        %462 = vmatpush1.msra.mxu0 %v349
        %463 = vmatprep.subr.mxu0 0.0
        %464 = vmatpush1.msra.mxu0 %v350
        %465 = vmatprep.subr.mxu0 0.0
        %466 = vmatpush1.msra.mxu0 %v351
        %467 = vmatprep.subr.mxu0 0.0
        %468 = vmatpush1.msra.mxu0 %v352
        %469 = vmatprep.subr.mxu0 0.0
        %470 = vmatpush1.msra.mxu0 %v353
        %471 = vmatprep.subr.mxu0 0.0
        %472 = vmatpush1.msra.mxu0 %v354
        %473 = vmatprep.subr.mxu0 0.0
        %474 = vmatpush1.msra.mxu0 %v355
        %475 = vmatprep.subr.mxu0 0.0
        %476 = vmatpush1.msra.mxu0 %v356
        %477 = vmatprep.subr.mxu0 0.0
        %478 = vmatpush1.msra.mxu0 %v357
        %479 = vmatprep.subr.mxu0 0.0
        %480 = vmatpush1.msra.mxu0 %v358
        %481 = vmatprep.subr.mxu0 0.0
        %482 = vmatpush1.msra.mxu0 %v359
        %483 = vmatprep.subr.mxu0 0.0
        %484 = vmatpush1.msra.mxu0 %v360
        %485 = vmatprep.subr.mxu0 0.0
        %486 = vmatpush1.msra.mxu0 %v361
        %487 = vmatprep.subr.mxu0 0.0
        %488 = vmatpush1.msra.mxu0 %v362
        %489 = vmatprep.subr.mxu0 0.0
        %490 = vmatpush1.msra.mxu0 %v363
        %491 = vmatprep.subr.mxu0 0.0
        %492 = vmatpush1.msra.mxu0 %v364
        %493 = vmatprep.subr.mxu0 0.0
        %494 = vmatpush1.msra.mxu0 %v365
        %495 = vmatprep.subr.mxu0 0.0
        %496 = vmatpush1.msra.mxu0 %v366
        %497 = vmatprep.subr.mxu0 0.0
        %498 = vmatpush1.msra.mxu0 %v367
        %499 = vmatprep.subr.mxu0 0.0
        %500 = vmatpush1.msra.mxu0 %v368
        %501 = vmatprep.subr.mxu0 0.0
        %502 = vmatpush1.msra.mxu0 %v369
        %503 = vmatprep.subr.mxu0 0.0
        %504 = vmatpush1.msra.mxu0 %v370
        %505 = vmatprep.subr.mxu0 0.0
        %506 = vmatpush1.msra.mxu0 %v371
        %507 = vmatprep.subr.mxu0 0.0
        %508 = vmatpush1.msra.mxu0 %v372
        %509 = vmatprep.mubr.f32.mxu0 %v308
        %510 = vmatmul.mubr.f32.gmra.mrb[0].mxu0 %v307
        %v511 = vpop.f32.mrb[0].mxu0
        %v512 = vadd.f32 %v442, %v511
        %v513 = vpop.f32.mrb[0].mxu0
        %514 = vdwg.mxu0
        %v515 = vld [vmem:[%s259] sm:$0xff]
        %v516 = vld [vmem:[%s259 + $0x8] sm:$0xff]
        %v517 = vld [vmem:[%s259 + $0x10] sm:$0xff]
        %v518 = vld [vmem:[%s259 + $0x18] sm:$0xff]
        %s519 = scalar_lea.vmem [#allocation8], 512
        %v520 = vld [vmem:[%s519] sm:$0xff]
        %v521 = vld [vmem:[%s519 + $0x8] sm:$0xff]
        %v522 = vld [vmem:[%s519 + $0x10] sm:$0xff]
        %v523 = vld [vmem:[%s519 + $0x18] sm:$0xff]
        %v524 = vld [vmem:[%s519 + $0x20] sm:$0xff]
        %v525 = vld [vmem:[%s519 + $0x28] sm:$0xff]
        %v526 = vld [vmem:[%s519 + $0x30] sm:$0xff]
        %v527 = vld [vmem:[%s519 + $0x38] sm:$0xff]
        %v528 = vld [vmem:[%s519 + $0x40] sm:$0xff]
        %v529 = vld [vmem:[%s519 + $0x48] sm:$0xff]
        %v530 = vld [vmem:[%s519 + $0x50] sm:$0xff]
        %v531 = vld [vmem:[%s519 + $0x58] sm:$0xff]
        %v532 = vld [vmem:[%s519 + $0x60] sm:$0xff]
        %v533 = vld [vmem:[%s519 + $0x68] sm:$0xff]
        %v534 = vld [vmem:[%s519 + $0x70] sm:$0xff]
        %v535 = vld [vmem:[%s519 + $0x78] sm:$0xff]
        %v536 = vld [vmem:[%s519 + $0x80] sm:$0xff]
        %v537 = vld [vmem:[%s519 + $0x88] sm:$0xff]
        %v538 = vld [vmem:[%s519 + $0x90] sm:$0xff]
        %v539 = vld [vmem:[%s519 + $0x98] sm:$0xff]
        %v540 = vld [vmem:[%s519 + $0xa0] sm:$0xff]
        %v541 = vld [vmem:[%s519 + $0xa8] sm:$0xff]
        %v542 = vld [vmem:[%s519 + $0xb0] sm:$0xff]
        %v543 = vld [vmem:[%s519 + $0xb8] sm:$0xff]
        %v544 = vld [vmem:[%s519 + $0xc0] sm:$0xff]
        %v545 = vld [vmem:[%s519 + $0xc8] sm:$0xff]
        %v546 = vld [vmem:[%s519 + $0xd0] sm:$0xff]
        %v547 = vld [vmem:[%s519 + $0xd8] sm:$0xff]
        %v548 = vld [vmem:[%s519 + $0xe0] sm:$0xff]
        %v549 = vld [vmem:[%s519 + $0xe8] sm:$0xff]
        %v550 = vld [vmem:[%s519 + $0xf0] sm:$0xff]
        %v551 = vld [vmem:[%s519 + $0xf8] sm:$0xff]
        %v552 = vld [vmem:[%s519 + $0x100] sm:$0xff]
        %v553 = vld [vmem:[%s519 + $0x108] sm:$0xff]
        %v554 = vld [vmem:[%s519 + $0x110] sm:$0xff]
        %v555 = vld [vmem:[%s519 + $0x118] sm:$0xff]
        %v556 = vld [vmem:[%s519 + $0x120] sm:$0xff]
        %v557 = vld [vmem:[%s519 + $0x128] sm:$0xff]
        %v558 = vld [vmem:[%s519 + $0x130] sm:$0xff]
        %v559 = vld [vmem:[%s519 + $0x138] sm:$0xff]
        %v560 = vld [vmem:[%s519 + $0x140] sm:$0xff]
        %v561 = vld [vmem:[%s519 + $0x148] sm:$0xff]
        %v562 = vld [vmem:[%s519 + $0x150] sm:$0xff]
        %v563 = vld [vmem:[%s519 + $0x158] sm:$0xff]
        %v564 = vld [vmem:[%s519 + $0x160] sm:$0xff]
        %v565 = vld [vmem:[%s519 + $0x168] sm:$0xff]
        %v566 = vld [vmem:[%s519 + $0x170] sm:$0xff]
        %v567 = vld [vmem:[%s519 + $0x178] sm:$0xff]
        %v568 = vld [vmem:[%s519 + $0x180] sm:$0xff]
        %v569 = vld [vmem:[%s519 + $0x188] sm:$0xff]
        %v570 = vld [vmem:[%s519 + $0x190] sm:$0xff]
        %v571 = vld [vmem:[%s519 + $0x198] sm:$0xff]
        %v572 = vld [vmem:[%s519 + $0x1a0] sm:$0xff]
        %v573 = vld [vmem:[%s519 + $0x1a8] sm:$0xff]
        %v574 = vld [vmem:[%s519 + $0x1b0] sm:$0xff]
        %v575 = vld [vmem:[%s519 + $0x1b8] sm:$0xff]
        %v576 = vld [vmem:[%s519 + $0x1c0] sm:$0xff]
        %v577 = vld [vmem:[%s519 + $0x1c8] sm:$0xff]
        %v578 = vld [vmem:[%s519 + $0x1d0] sm:$0xff]
        %v579 = vld [vmem:[%s519 + $0x1d8] sm:$0xff]
        %v580 = vld [vmem:[%s519 + $0x1e0] sm:$0xff]
        %v581 = vld [vmem:[%s519 + $0x1e8] sm:$0xff]
        %v582 = vld [vmem:[%s519 + $0x1f0] sm:$0xff]
        %v583 = vld [vmem:[%s519 + $0x1f8] sm:$0xff]
        %s584 = sld [smem:[#allocation9 + $0x1]]
        %v585 = vstv %s584
        %586 = vmatprep.subr.mxu0 0.0
        %587 = vmatpush1.msra.mxu0 %v520
        %588 = vmatprep.subr.mxu0 0.0
        %589 = vmatpush1.msra.mxu0 %v521
        %590 = vmatprep.subr.mxu0 0.0
        %591 = vmatpush1.msra.mxu0 %v522
        %592 = vmatprep.subr.mxu0 0.0
        %593 = vmatpush1.msra.mxu0 %v523
        %594 = vmatprep.subr.mxu0 0.0
        %595 = vmatpush1.msra.mxu0 %v524
        %596 = vmatprep.subr.mxu0 0.0
        %597 = vmatpush1.msra.mxu0 %v525
        %598 = vmatprep.subr.mxu0 0.0
        %599 = vmatpush1.msra.mxu0 %v526
        %600 = vmatprep.subr.mxu0 0.0
        %601 = vmatpush1.msra.mxu0 %v527
        %602 = vmatprep.subr.mxu0 0.0
        %603 = vmatpush1.msra.mxu0 %v528
        %604 = vmatprep.subr.mxu0 0.0
        %605 = vmatpush1.msra.mxu0 %v529
        %606 = vmatprep.subr.mxu0 0.0
        %607 = vmatpush1.msra.mxu0 %v530
        %608 = vmatprep.subr.mxu0 0.0
        %609 = vmatpush1.msra.mxu0 %v531
        %610 = vmatprep.subr.mxu0 0.0
        %611 = vmatpush1.msra.mxu0 %v532
        %612 = vmatprep.subr.mxu0 0.0
        %613 = vmatpush1.msra.mxu0 %v533
        %614 = vmatprep.subr.mxu0 0.0
        %615 = vmatpush1.msra.mxu0 %v534
        %616 = vmatprep.subr.mxu0 0.0
        %617 = vmatpush1.msra.mxu0 %v535
        %618 = vmatprep.subr.mxu0 0.0
        %619 = vmatpush1.msra.mxu0 %v536
        %620 = vmatprep.subr.mxu0 0.0
        %621 = vmatpush1.msra.mxu0 %v537
        %622 = vmatprep.subr.mxu0 0.0
        %623 = vmatpush1.msra.mxu0 %v538
        %624 = vmatprep.subr.mxu0 0.0
        %625 = vmatpush1.msra.mxu0 %v539
        %626 = vmatprep.subr.mxu0 0.0
        %627 = vmatpush1.msra.mxu0 %v540
        %628 = vmatprep.subr.mxu0 0.0
        %629 = vmatpush1.msra.mxu0 %v541
        %630 = vmatprep.subr.mxu0 0.0
        %631 = vmatpush1.msra.mxu0 %v542
        %632 = vmatprep.subr.mxu0 0.0
        %633 = vmatpush1.msra.mxu0 %v543
        %634 = vmatprep.subr.mxu0 0.0
        %635 = vmatpush1.msra.mxu0 %v544
        %636 = vmatprep.subr.mxu0 0.0
        %637 = vmatpush1.msra.mxu0 %v545
        %638 = vmatprep.subr.mxu0 0.0
        %639 = vmatpush1.msra.mxu0 %v546
        %640 = vmatprep.subr.mxu0 0.0
        %641 = vmatpush1.msra.mxu0 %v547
        %642 = vmatprep.subr.mxu0 0.0
        %643 = vmatpush1.msra.mxu0 %v548
        %644 = vmatprep.subr.mxu0 0.0
        %645 = vmatpush1.msra.mxu0 %v549
        %646 = vmatprep.subr.mxu0 0.0
        %647 = vmatpush1.msra.mxu0 %v550
        %648 = vmatprep.subr.mxu0 0.0
        %649 = vmatpush1.msra.mxu0 %v551
        %650 = vmatprep.mubr.f32.mxu0 %v516
        %651 = vmatmul.mubr.f32.gmra.mrb[0].mxu0 %v515
        %v652 = vpop.f32.mrb[0].mxu0
        %v653 = vadd.f32 %v585, %v652
        %v654 = vpop.f32.mrb[0].mxu0
        %655 = vdwg.mxu0
        %656 = vmatprep.subr.mxu0 0.0
        %657 = vmatpush1.msra.mxu0 %v552
        %658 = vmatprep.subr.mxu0 0.0
        %659 = vmatpush1.msra.mxu0 %v553
        %660 = vmatprep.subr.mxu0 0.0
        %661 = vmatpush1.msra.mxu0 %v554
        %662 = vmatprep.subr.mxu0 0.0
        %663 = vmatpush1.msra.mxu0 %v555
        %664 = vmatprep.subr.mxu0 0.0
        %665 = vmatpush1.msra.mxu0 %v556
        %666 = vmatprep.subr.mxu0 0.0
        %667 = vmatpush1.msra.mxu0 %v557
        %668 = vmatprep.subr.mxu0 0.0
        %669 = vmatpush1.msra.mxu0 %v558
        %670 = vmatprep.subr.mxu0 0.0
        %671 = vmatpush1.msra.mxu0 %v559
        %672 = vmatprep.subr.mxu0 0.0
        %673 = vmatpush1.msra.mxu0 %v560
        %674 = vmatprep.subr.mxu0 0.0
        %675 = vmatpush1.msra.mxu0 %v561
        %676 = vmatprep.subr.mxu0 0.0
        %677 = vmatpush1.msra.mxu0 %v562
        %678 = vmatprep.subr.mxu0 0.0
        %679 = vmatpush1.msra.mxu0 %v563
        %680 = vmatprep.subr.mxu0 0.0
        %681 = vmatpush1.msra.mxu0 %v564
        %682 = vmatprep.subr.mxu0 0.0
        %683 = vmatpush1.msra.mxu0 %v565
        %684 = vmatprep.subr.mxu0 0.0
        %685 = vmatpush1.msra.mxu0 %v566
        %686 = vmatprep.subr.mxu0 0.0
        %687 = vmatpush1.msra.mxu0 %v567
        %688 = vmatprep.subr.mxu0 0.0
        %689 = vmatpush1.msra.mxu0 %v568
        %690 = vmatprep.subr.mxu0 0.0
        %691 = vmatpush1.msra.mxu0 %v569
        %692 = vmatprep.subr.mxu0 0.0
        %693 = vmatpush1.msra.mxu0 %v570
        %694 = vmatprep.subr.mxu0 0.0
        %695 = vmatpush1.msra.mxu0 %v571
        %696 = vmatprep.subr.mxu0 0.0
        %697 = vmatpush1.msra.mxu0 %v572
        %698 = vmatprep.subr.mxu0 0.0
        %699 = vmatpush1.msra.mxu0 %v573
        %700 = vmatprep.subr.mxu0 0.0
        %701 = vmatpush1.msra.mxu0 %v574
        %702 = vmatprep.subr.mxu0 0.0
        %703 = vmatpush1.msra.mxu0 %v575
        %704 = vmatprep.subr.mxu0 0.0
        %705 = vmatpush1.msra.mxu0 %v576
        %706 = vmatprep.subr.mxu0 0.0
        %707 = vmatpush1.msra.mxu0 %v577
        %708 = vmatprep.subr.mxu0 0.0
        %709 = vmatpush1.msra.mxu0 %v578
        %710 = vmatprep.subr.mxu0 0.0
        %711 = vmatpush1.msra.mxu0 %v579
        %712 = vmatprep.subr.mxu0 0.0
        %713 = vmatpush1.msra.mxu0 %v580
        %714 = vmatprep.subr.mxu0 0.0
        %715 = vmatpush1.msra.mxu0 %v581
        %716 = vmatprep.subr.mxu0 0.0
        %717 = vmatpush1.msra.mxu0 %v582
        %718 = vmatprep.subr.mxu0 0.0
        %719 = vmatpush1.msra.mxu0 %v583
        %720 = vmatprep.mubr.f32.mxu0 %v518
        %721 = vmatmul.mubr.f32.gmra.mrb[0].mxu0 %v517
        %v722 = vpop.f32.mrb[0].mxu0
        %v723 = vadd.f32 %v653, %v722
        %v724 = vpop.f32.mrb[0].mxu0
        %725 = vdwg.mxu0
        %v726 = vmax.f32 %v512, 0.0
        %v727 = vand.u32 2147483647, %v512
        %v728 = vsub.f32 0.0, %v727
        %v729 = vmul.f32 %v728, 1.442695
        %v730 = vpow.pop %v729
        %v731 = vadd.f32 %v730, 1.0
        %v732 = vlog2.pop %v731
        %v733 = vmul.f32 %v732, 0.6931472
        %v734 = vmul.f32 -0.5, %v730
        %v735 = vadd.f32 %v734, 1.0
        %v736 = vmul.f32 %v735, %v730
        %v737 = vand.u32 2147483647, %v730
        %vm738 = vcmp.lt.f32.partialorder %v737, 0.0004427343
        %v739 = vsel %vm738, %v736, %v733
        %v740 = vadd.f32 %v726, %v739
        %v741 = vmax.f32 %v723, 0.0
        %v742 = vand.u32 2147483647, %v723
        %v743 = vsub.f32 0.0, %v742
        %v744 = vmul.f32 %v743, 1.442695
        %v745 = vpow.pop %v744
        %v746 = vadd.f32 %v745, 1.0
        %v747 = vlog2.pop %v746
        %v748 = vmul.f32 %v747, 0.6931472
        %v749 = vmul.f32 -0.5, %v745
        %v750 = vadd.f32 %v749, 1.0
        %v751 = vmul.f32 %v750, %v745
        %v752 = vand.u32 2147483647, %v745
        %vm753 = vcmp.lt.f32.partialorder %v752, 0.0004427343
        %v754 = vsel %vm753, %v751, %v748
        %v755 = vadd.f32 %v741, %v754
        %v756 = vadd.f32 %v740, %v755
        %v757 = vld [vmem:[%s297] sm:$0xff]
        %v758 = vadd.f32 %v756, 0.0
        %v759 = vadd.f32 %v757, %v758
        %760 = vst [vmem:[%s297] sm:$0xff] %v759
        %s761 = sand.u32 %s143, 1
        %s762 = scalar_lea.sflag [#allocation4], %s761
        %s763 = sand.u32 %s143, 1
        %s764 = smul.addr %s763, 8
        %s765 = scalar_lea.vmem [#allocation10], %s764
        // Predicated region
        $region57: #{tpu_custom_call.1} parent=35 // pred_check
          %p766 = pneg %p153
        $region58: #{tpu_custom_call.1} parent=35 // pred_check_branch
          %768 = sbr.rel (%p766) target = $region60
        $region59: #{tpu_custom_call.1} parent=35 // pred_region
          %s770 = ssub.s32 128, 128
          %771 = vsyncadd %s762, %s770
          %s772 = smul.addr %s29, 128
          %s773 = scalar_lea.hbm %s4, %s772
          %s775 = sshll.u32 %s765, 4
          %s776 = int_to_ptr.vmem [resolvable:$true] %s775
          %778 = dma.vmem_to_hbm [thread:$0]  %s776, 128, %s773, %s762
        $region60: #{tpu_custom_call.1} parent=35 // pred_fallthru
          _
      $region36: #{tpu_custom_call.1} parent=5 // pred_fallthru
        _
      %p779 = scmp.le.s32.totalorder 2, %s20
      // Predicated region
      $region61: #{tpu_custom_call.1} parent=5 // pred_check
        %p780 = pneg %p779
      $region62: #{tpu_custom_call.1} parent=5 // pred_check_branch
        %782 = sbr.rel (%p780) target = $region64
      $region63: #{tpu_custom_call.1} parent=5 // pred_region
        %s783 = ssub.s32 %s20, 2
        // Predicated region
        $region65: #{tpu_custom_call.1} parent=63 // pred_check
          %p784 = pneg %p159
        $region66: #{tpu_custom_call.1} parent=63 // pred_check_branch
          %786 = sbr.rel (%p784) target = $region68
        $region67: #{tpu_custom_call.1} parent=63 // pred_region
          %s787 = sand.u32 %s144, 1
          %s788 = scalar_lea.sflag [#allocation4], %s787
          %s789 = sand.u32 %s144, 1
          %s790 = smul.addr %s789, 8
          %s791 = scalar_lea.vmem [#allocation10], %s790
          %792 = dma.done %s788, 128
        $region68: #{tpu_custom_call.1} parent=63 // pred_fallthru
          _
      $region64: #{tpu_custom_call.1} parent=5 // pred_fallthru
        _
    $region6: #{tpu_custom_call.1} parent=1 // loop_footer
      %s24 = sadd.s32 1, %s20
    $region7: #{tpu_custom_call.1} parent=1 // loop_footer_branch
      %19 = sbr.rel target = $region3
    $region8: #{tpu_custom_call.1} parent=1 // loop_exit
      _
    %793 = vsyncpa [#allocation3], 1
    %s794 = scalar_lea.sflag [#allocation3], 1
    %795 = vsyncpa %s794, 1
    %796 = vsyncpa [#allocation7], 1
    %s797 = scalar_lea.sflag [#allocation7], 1
    %798 = vsyncpa %s797, 1
    %799 = vsyncpa [#allocation4], 1
    %s800 = scalar_lea.sflag [#allocation4], 1
    %801 = vsyncpa %s800, 1
    %802 = vsyncpa [#allocation5], 1
    %s803 = scalar_lea.sflag [#allocation5], 1
    %804 = vsyncpa %s803, 1

</llo_original>
